<compile_context>
chip_gen: v6e
topology: v6e:2x2x1
jax: 0.10.0
libtpu: 0.0.40
codegen_flags: <defaults>
</compile_context>

<pallas_src>
import math

import jax
import jax.numpy as jnp
import numpy as np
from jax.experimental import pallas as pl
from jax.experimental.pallas import tpu as pltpu

# ---------------- model hyper-parameters (small, consistent with module) ----
D_MODEL = 32
NHEAD = 4
HEAD_DIM = D_MODEL // NHEAD
SCALE = 1.0 / math.sqrt(HEAD_DIM)
M_NODES = 16                      # number of graph nodes


# --------------------------- Pallas kernel ---------------------------------
def _mha_kernel(s_ref, mask_ref, bias_ref, wqkv_ref, bqkv_ref, wo_ref, bo_ref,
                o_ref):
    s = s_ref[...]                                   # [M, C]
    mask = mask_ref[...]                             # [M, M]  1.0 where edge s->t
    bias = bias_ref[...]                             # [M, M]  0 / -1e30 additive mask

    # fused Q/KV projection: single MXU pass  [M, C] @ [C, 3C]
    qkv = jnp.dot(s, wqkv_ref[...],
                  preferred_element_type=jnp.float32) + bqkv_ref[...]   # [M, 3C]

    # head-major [H, M, hd] operands (leading-axis stack keeps downstream
    # einsums vreg-dense; no lane-axis concat, no per-head matmul loop).
    # qkv column layout: [ q:'m (h d)' | kv:'m (h 2d)' (k then v per head) ]
    qh = jnp.stack([qkv[:, h * HEAD_DIM:(h + 1) * HEAD_DIM]
                    for h in range(NHEAD)], axis=0) * jnp.float32(SCALE)  # [H,M,hd]
    kh = jnp.stack([qkv[:, D_MODEL + 2 * h * HEAD_DIM:
                           D_MODEL + 2 * h * HEAD_DIM + HEAD_DIM]
                    for h in range(NHEAD)], axis=0)                       # [H,M,hd]
    vh = jnp.stack([qkv[:, D_MODEL + 2 * h * HEAD_DIM + HEAD_DIM:
                           D_MODEL + 2 * (h + 1) * HEAD_DIM]
                    for h in range(NHEAD)], axis=0)                       # [H,M,hd]

    # scores[h, t, s] = <q[h,t], k[h,s]>  — contraction on the last axis of
    # both operands (no explicit .T / XLU transpose), batched over heads.
    scores = jnp.einsum('hmd,hnd->hmn', qh, kh,
                        preferred_element_type=jnp.float32)               # [H,M,M]
    scores = scores + bias                            # additive mask, bcast over H

    # per-target softmax over source nodes == per-edge softmax of the module
    row_max = jnp.max(scores, axis=2, keepdims=True)
    p = jnp.exp(scores - row_max) * mask              # mask zeroes isolated rows
    denom = jnp.sum(p, axis=2, keepdims=True)
    inv = pl.reciprocal(jnp.maximum(denom, jnp.float32(1e-30)), approx=True)
    attn = p * inv

    # weighted scatter-sum of v over incoming edges == attn @ v (per head)
    oh = jnp.einsum('hmn,hnd->hmd', attn, vh,
                    preferred_element_type=jnp.float32)                   # [H,M,hd]

    # output projection: concat(heads) @ wo + bo  ==  sum_h oh[h] @ wo[h] + bo
    out = jnp.sum(jnp.einsum('hmd,hdc->hmc', oh, wo_ref[...],
                             preferred_element_type=jnp.float32), axis=0)  # [M,C]
    o_ref[...] = out + bo_ref[...]


def multi_head_attention(s, edge_index, params):
    """s: [M, C] float32, edge_index: [2, E] int32."""
    M, C = s.shape
    src, tgt = edge_index[0], edge_index[1]
    # dense adjacency mask + additive bias, built in glue (data-dependent scatter)
    mask = jnp.zeros((M, M), jnp.float32).at[tgt, src].set(1.0)
    bias = (mask - 1.0) * jnp.float32(1e30)
    # TODO(synk): a true sparse-edge kernel would need data-dependent DMA gather;
    #             here the edge list is densified into a mask instead.

    # fused projection weights ([C, 3C]), output weight pre-split per head
    wqkv = jnp.concatenate([params["wq"], params["wkv"]], axis=1)   # [C, 3C]
    bqkv = jnp.concatenate([params["bq"], params["bkv"]], axis=1)   # [1, 3C]
    wo_h = params["wo"].reshape(NHEAD, HEAD_DIM, C)                 # [H, hd, C]

    # TODO(synk): for batched graphs / larger M, add a grid over graphs or
    #             target-node blocks ("parallel") for lane-dense output and
    #             v7x dual-TensorCore utilization; single 16x32 graph here.
    vm = pl.BlockSpec(memory_space=pltpu.MemorySpace.VMEM)
    out = pl.pallas_call(
        _mha_kernel,
        out_shape=jax.ShapeDtypeStruct((M, C), jnp.float32),
        in_specs=[vm] * 7,
        out_specs=vm,
    )(s, mask, bias, wqkv, bqkv, wo_h, params["bo"])
    return out


# ------------------------- pure-JAX reference -------------------------------
def reference(s, edge_index, params):
    M, C = s.shape
    q = s @ params["wq"] + params["bq"][0]
    kv = s @ params["wkv"] + params["bkv"][0]
    q = q.reshape(M, NHEAD, HEAD_DIM)
    kv = kv.reshape(M, NHEAD, 2 * HEAD_DIM)
    k, v = kv[..., :HEAD_DIM], kv[..., HEAD_DIM:]
    src, tgt = edge_index[0], edge_index[1]
    a = jnp.einsum('ehc,ehc->eh', q[tgt], k[src]) * SCALE
    a_max = jax.ops.segment_max(a, tgt, num_segments=M)[tgt]
    a_exp = jnp.exp(a - a_max)
    denom = jax.ops.segment_sum(a_exp, tgt, num_segments=M)[tgt]
    a_sm = a_exp / denom
    o_msg = a_sm[..., None] * v[src]
    o = jax.ops.segment_sum(o_msg, tgt, num_segments=M)
    o = o.reshape(M, C)
    return o @ params["wo"] + params["bo"][0]


# --------------------------------- main --------------------------------------
if __name__ == "__main__":
    key = jax.random.PRNGKey(0)
    ks = jax.random.split(key, 8)

    # deterministic synthetic parameters ([in, out] layout, biases as [1, out])
    params = {
        "wq":  jax.random.normal(ks[0], (D_MODEL, D_MODEL), jnp.float32) * 0.1,
        "bq":  jax.random.normal(ks[1], (1, D_MODEL), jnp.float32) * 0.1,
        "wkv": jax.random.normal(ks[2], (D_MODEL, 2 * D_MODEL), jnp.float32) * 0.1,
        "bkv": jax.random.normal(ks[3], (1, 2 * D_MODEL), jnp.float32) * 0.1,
        "wo":  jax.random.normal(ks[4], (D_MODEL, D_MODEL), jnp.float32) * 0.1,
        "bo":  jax.random.normal(ks[5], (1, D_MODEL), jnp.float32) * 0.1,
    }

    # node features
    s = jax.random.normal(ks[6], (M_NODES, D_MODEL), jnp.float32)

    # deterministic, duplicate-free edge set: each target t receives edges from
    # (t+1), (t+3), (t+7) mod M  ->  E = 3*M edges
    tgt = np.repeat(np.arange(M_NODES), 3)
    src = np.concatenate([(np.arange(M_NODES) + d) % M_NODES for d in (1, 3, 7)])
    src = src.reshape(3, M_NODES).T.reshape(-1)
    edge_index = jnp.asarray(np.stack([src, tgt], axis=0), jnp.int32)   # [2, E]

    out = multi_head_attention(s, edge_index, params)
    out = jax.block_until_ready(out)

    ref = reference(s, edge_index, params)
    # tolerance accounts for the EUP approximate-reciprocal softmax denominator
    np.testing.assert_allclose(np.asarray(out), np.asarray(ref),
                               rtol=2e-3, atol=2e-3)

    print("KERNEL_OK")
</pallas_src>

<mosaic_0001>
module attributes {stable_mosaic.version = 11 : i64} {
  func.func @_mha_kernel(%arg0: memref<16x32xf32, #tpu.memory_space<vmem>>, %arg1: memref<16x16xf32, #tpu.memory_space<vmem>>, %arg2: memref<16x16xf32, #tpu.memory_space<vmem>>, %arg3: memref<32x96xf32, #tpu.memory_space<vmem>>, %arg4: memref<1x96xf32, #tpu.memory_space<vmem>>, %arg5: memref<4x8x32xf32, #tpu.memory_space<vmem>>, %arg6: memref<1x32xf32, #tpu.memory_space<vmem>>, %arg7: memref<16x32xf32, #tpu.memory_space<vmem>>) attributes {dimension_semantics = [], scalar_prefetch = 0 : i64, scratch_operands = 0 : i64, tpu.core_type = #tpu.core_type<tc>} {
    %c0 = arith.constant 0 : index
    %c0_0 = arith.constant 0 : index
    %0 = vector.load %arg0[%c0, %c0_0] : memref<16x32xf32, #tpu.memory_space<vmem>>, vector<16x32xf32>
    %c0_1 = arith.constant 0 : index
    %c0_2 = arith.constant 0 : index
    %1 = vector.load %arg1[%c0_1, %c0_2] : memref<16x16xf32, #tpu.memory_space<vmem>>, vector<16x16xf32>
    %c0_3 = arith.constant 0 : index
    %c0_4 = arith.constant 0 : index
    %2 = vector.load %arg2[%c0_3, %c0_4] : memref<16x16xf32, #tpu.memory_space<vmem>>, vector<16x16xf32>
    %c0_5 = arith.constant 0 : index
    %c0_6 = arith.constant 0 : index
    %3 = vector.load %arg3[%c0_5, %c0_6] : memref<32x96xf32, #tpu.memory_space<vmem>>, vector<32x96xf32>
    %cst = arith.constant dense<0.000000e+00> : vector<16x96xf32>
    %4 = tpu.matmul %0, %3, %cst {dimension_numbers = #tpu.dot_dimension_numbers<[1], [0], [0], [1], [0, 0, 1, 1], [], []>} : vector<16x32xf32>, vector<32x96xf32>, vector<16x96xf32> -> vector<16x96xf32>
    %c0_7 = arith.constant 0 : index
    %c0_8 = arith.constant 0 : index
    %5 = vector.load %arg4[%c0_7, %c0_8] : memref<1x96xf32, #tpu.memory_space<vmem>>, vector<1x96xf32>
    %6 = vector.broadcast %5 : vector<1x96xf32> to vector<16x96xf32>
    %7 = arith.addf %4, %6 : vector<16x96xf32>
    %8 = vector.extract_strided_slice %7 {offsets = [0, 0], sizes = [16, 8], strides = [1, 1]} : vector<16x96xf32> to vector<16x8xf32>
    %9 = vector.extract_strided_slice %7 {offsets = [0, 8], sizes = [16, 8], strides = [1, 1]} : vector<16x96xf32> to vector<16x8xf32>
    %10 = vector.extract_strided_slice %7 {offsets = [0, 16], sizes = [16, 8], strides = [1, 1]} : vector<16x96xf32> to vector<16x8xf32>
    %11 = vector.extract_strided_slice %7 {offsets = [0, 24], sizes = [16, 8], strides = [1, 1]} : vector<16x96xf32> to vector<16x8xf32>
    %12 = vector.shape_cast %8 : vector<16x8xf32> to vector<1x16x8xf32>
    %13 = vector.shape_cast %9 : vector<16x8xf32> to vector<1x16x8xf32>
    %14 = vector.shape_cast %10 : vector<16x8xf32> to vector<1x16x8xf32>
    %15 = vector.shape_cast %11 : vector<16x8xf32> to vector<1x16x8xf32>
    %16 = tpu.concatenate %12, %13, %14, %15 in 0 : vector<1x16x8xf32>, vector<1x16x8xf32>, vector<1x16x8xf32>, vector<1x16x8xf32> -> vector<4x16x8xf32>
    %cst_9 = arith.constant 0.353553385 : f32
    %17 = vector.broadcast %cst_9 : f32 to vector<4x16x8xf32>
    %18 = arith.mulf %16, %17 : vector<4x16x8xf32>
    %19 = vector.extract_strided_slice %7 {offsets = [0, 32], sizes = [16, 8], strides = [1, 1]} : vector<16x96xf32> to vector<16x8xf32>
    %20 = vector.extract_strided_slice %7 {offsets = [0, 48], sizes = [16, 8], strides = [1, 1]} : vector<16x96xf32> to vector<16x8xf32>
    %21 = vector.extract_strided_slice %7 {offsets = [0, 64], sizes = [16, 8], strides = [1, 1]} : vector<16x96xf32> to vector<16x8xf32>
    %22 = vector.extract_strided_slice %7 {offsets = [0, 80], sizes = [16, 8], strides = [1, 1]} : vector<16x96xf32> to vector<16x8xf32>
    %23 = vector.shape_cast %19 : vector<16x8xf32> to vector<1x16x8xf32>
    %24 = vector.shape_cast %20 : vector<16x8xf32> to vector<1x16x8xf32>
    %25 = vector.shape_cast %21 : vector<16x8xf32> to vector<1x16x8xf32>
    %26 = vector.shape_cast %22 : vector<16x8xf32> to vector<1x16x8xf32>
    %27 = tpu.concatenate %23, %24, %25, %26 in 0 : vector<1x16x8xf32>, vector<1x16x8xf32>, vector<1x16x8xf32>, vector<1x16x8xf32> -> vector<4x16x8xf32>
    %28 = vector.extract_strided_slice %7 {offsets = [0, 40], sizes = [16, 8], strides = [1, 1]} : vector<16x96xf32> to vector<16x8xf32>
    %29 = vector.extract_strided_slice %7 {offsets = [0, 56], sizes = [16, 8], strides = [1, 1]} : vector<16x96xf32> to vector<16x8xf32>
    %30 = vector.extract_strided_slice %7 {offsets = [0, 72], sizes = [16, 8], strides = [1, 1]} : vector<16x96xf32> to vector<16x8xf32>
    %31 = vector.extract_strided_slice %7 {offsets = [0, 88], sizes = [16, 8], strides = [1, 1]} : vector<16x96xf32> to vector<16x8xf32>
    %32 = vector.shape_cast %28 : vector<16x8xf32> to vector<1x16x8xf32>
    %33 = vector.shape_cast %29 : vector<16x8xf32> to vector<1x16x8xf32>
    %34 = vector.shape_cast %30 : vector<16x8xf32> to vector<1x16x8xf32>
    %35 = vector.shape_cast %31 : vector<16x8xf32> to vector<1x16x8xf32>
    %36 = tpu.concatenate %32, %33, %34, %35 in 0 : vector<1x16x8xf32>, vector<1x16x8xf32>, vector<1x16x8xf32>, vector<1x16x8xf32> -> vector<4x16x8xf32>
    "tpu.trace_start"() <{level = 10 : i32, message = "hmd,hnd->hmn"}> : () -> ()
    %cst_10 = arith.constant dense<0.000000e+00> : vector<4x16x16xf32>
    %37 = tpu.matmul %18, %27, %cst_10 {dimension_numbers = #tpu.dot_dimension_numbers<[2], [2], [1], [1], [0, 0, 0, 1, 1, 1], [0], [0]>} : vector<4x16x8xf32>, vector<4x16x8xf32>, vector<4x16x16xf32> -> vector<4x16x16xf32>
    "tpu.trace_stop"() : () -> ()
    %38 = vector.shape_cast %2 : vector<16x16xf32> to vector<1x16x16xf32>
    %39 = vector.broadcast %38 : vector<1x16x16xf32> to vector<4x16x16xf32>
    %40 = arith.addf %37, %39 : vector<4x16x16xf32>
    %cst_11 = arith.constant dense<0xFF800000> : vector<4x16xf32>
    %41 = vector.multi_reduction <maximumf>, %40, %cst_11 [2] : vector<4x16x16xf32> to vector<4x16xf32>
    %42 = vector.shape_cast %41 : vector<4x16xf32> to vector<4x16x1xf32>
    %43 = vector.broadcast %42 : vector<4x16x1xf32> to vector<4x16x16xf32>
    %44 = arith.subf %40, %43 : vector<4x16x16xf32>
    %45 = math.exp %44 : vector<4x16x16xf32>
    %46 = vector.shape_cast %1 : vector<16x16xf32> to vector<1x16x16xf32>
    %47 = vector.broadcast %46 : vector<1x16x16xf32> to vector<4x16x16xf32>
    %48 = arith.mulf %45, %47 : vector<4x16x16xf32>
    %cst_12 = arith.constant dense<0.000000e+00> : vector<4x16xf32>
    %49 = vector.multi_reduction <add>, %48, %cst_12 [2] : vector<4x16x16xf32> to vector<4x16xf32>
    %50 = vector.shape_cast %49 : vector<4x16xf32> to vector<4x16x1xf32>
    %cst_13 = arith.constant 1.000000e-30 : f32
    %51 = vector.broadcast %cst_13 : f32 to vector<4x16x1xf32>
    %52 = arith.maximumf %50, %51 : vector<4x16x1xf32>
    %53 = tpu.reciprocal %52 {approx = true} : vector<4x16x1xf32> -> vector<4x16x1xf32>
    %54 = vector.broadcast %53 : vector<4x16x1xf32> to vector<4x16x16xf32>
    %55 = arith.mulf %48, %54 : vector<4x16x16xf32>
    "tpu.trace_start"() <{level = 10 : i32, message = "hmn,hnd->hmd"}> : () -> ()
    %cst_14 = arith.constant dense<0.000000e+00> : vector<4x16x8xf32>
    %56 = tpu.matmul %55, %36, %cst_14 {dimension_numbers = #tpu.dot_dimension_numbers<[2], [1], [1], [2], [0, 0, 0, 1, 1, 2], [0], [0]>} : vector<4x16x16xf32>, vector<4x16x8xf32>, vector<4x16x8xf32> -> vector<4x16x8xf32>
    "tpu.trace_stop"() : () -> ()
    %c0_15 = arith.constant 0 : index
    %c0_16 = arith.constant 0 : index
    %c0_17 = arith.constant 0 : index
    %57 = vector.load %arg5[%c0_15, %c0_16, %c0_17] : memref<4x8x32xf32, #tpu.memory_space<vmem>>, vector<4x8x32xf32>
    "tpu.trace_start"() <{level = 10 : i32, message = "hmd,hdc->hmc"}> : () -> ()
    %cst_18 = arith.constant dense<0.000000e+00> : vector<4x16x32xf32>
    %58 = tpu.matmul %56, %57, %cst_18 {dimension_numbers = #tpu.dot_dimension_numbers<[2], [1], [1], [2], [0, 0, 0, 1, 1, 2], [0], [0]>} : vector<4x16x8xf32>, vector<4x8x32xf32>, vector<4x16x32xf32> -> vector<4x16x32xf32>
    "tpu.trace_stop"() : () -> ()
    %cst_19 = arith.constant dense<0.000000e+00> : vector<16x32xf32>
    %59 = vector.multi_reduction <add>, %58, %cst_19 [0] : vector<4x16x32xf32> to vector<16x32xf32>
    %c0_20 = arith.constant 0 : index
    %c0_21 = arith.constant 0 : index
    %60 = vector.load %arg6[%c0_20, %c0_21] : memref<1x32xf32, #tpu.memory_space<vmem>>, vector<1x32xf32>
    %61 = vector.broadcast %60 : vector<1x32xf32> to vector<16x32xf32>
    %62 = arith.addf %59, %61 : vector<16x32xf32>
    %c0_22 = arith.constant 0 : index
    %c0_23 = arith.constant 0 : index
    %63 = vector.load %arg7[%c0_22, %c0_23] : memref<16x32xf32, #tpu.memory_space<vmem>>, vector<16x32xf32>
    tpu.vector_store %arg7[%c0_22, %c0_23], %62 {strides = array<i32>} : memref<16x32xf32, #tpu.memory_space<vmem>>, vector<16x32xf32>,
    return
  }
}

</mosaic_0001>

<llo_original>
// kernel: tpu_custom_call.1
$region0: #{tpu_custom_call.1}
  #allocation0 [shape = 'u32[]', space=smem, size = 0x4, offset = 0x4, fixed_abs, tag = 'smem constant byte address 0x4 - core index']
  #allocation1 [shape = 'u32[144,128]{1,0:T(1,128)}', space=vmem, size = 0x12000, scoped, tag = 'internal scratch']
  %s0 = inlined_call_operand.hbm [shape: f32[16,32], index: 0, kind: input, shape index: {}]
  %s1 = inlined_call_operand.hbm [shape: f32[16,16], index: 1, kind: input, shape index: {}]
  %s2 = inlined_call_operand.hbm [shape: f32[16,16], index: 2, kind: input, shape index: {}]
  %s3 = inlined_call_operand.hbm [shape: f32[32,96], index: 3, kind: input, shape index: {}]
  %s4 = inlined_call_operand.vmem [shape: f32[1,96], index: 4, kind: input, shape index: {}]
  %s5 = inlined_call_operand.hbm [shape: f32[4,8,32], index: 5, kind: input, shape index: {}]
  %s6 = inlined_call_operand.vmem [shape: f32[1,32], index: 6, kind: input, shape index: {}]
  %s7 = inlined_call_operand.hbm [shape: f32[16,32], index: 7, kind: output, shape index: {}]
  %s8 = sld [smem:[#allocation0]]
  $region58: #{tpu_custom_call.1} parent=0
    _
  %s10 = ssub.s32 1, %s8
  %s11 = scalar_select 0, %s10, %s8
  $region1: #{tpu_custom_call.1} parent=0
    #allocation2 [shape = 'u8[8192]{0}', space=vmem, size = 0x2000, scoped, tag = 'input window, operand 0, single buffered']
    #allocation3 [shape = 's32[1]{0}', space=sflag, size = 0x4, scoped, tag = 'scoped memory for tpu_custom_call.1']
    #allocation4 [shape = 's32[1]{0}', space=sflag, size = 0x4, scoped, tag = 'scoped memory for tpu_custom_call.1']
    #allocation5 [shape = 'u8[8192]{0}', space=vmem, size = 0x2000, scoped, tag = 'input window, operand 1, single buffered']
    #allocation6 [shape = 's32[1]{0}', space=sflag, size = 0x4, scoped, tag = 'scoped memory for tpu_custom_call.1']
    #allocation7 [shape = 'u8[8192]{0}', space=vmem, size = 0x2000, scoped, tag = 'input window, operand 2, single buffered']
    #allocation8 [shape = 'u8[16384]{0}', space=vmem, size = 0x4000, scoped, tag = 'input window, operand 3, single buffered']
    #allocation9 [shape = 's32[1]{0}', space=sflag, size = 0x4, scoped, tag = 'scoped memory for tpu_custom_call.1']
    #allocation10 [shape = 'u8[16384]{0}', space=vmem, size = 0x4000, scoped, tag = 'input window, operand 5, single buffered']
    #allocation11 [shape = 'u8[8192]{0}', space=vmem, size = 0x2000, scoped, tag = 'output window, operand 0, single buffered']
    %12 = vsyncpa [#allocation3], 0
    %13 = vsyncpa [#allocation6], 0
    %14 = vsyncpa [#allocation9], 0
    %15 = vsyncpa [#allocation4], 0
    // Predicated region
    $region2: #{tpu_custom_call.1} parent=1 // pred_check
      _
    $region3: #{tpu_custom_call.1} parent=1 // pred_check_branch
      %17 = sbr.rel (0) target = $region5
    $region4: #{tpu_custom_call.1} parent=1 // pred_region
      %s19 = ssub.s32 256, 256
      %20 = vsyncadd [#allocation3], %s19
      %s21 = sshll.u32 [#allocation2], 4
      %s22 = int_to_ptr.vmem [resolvable:$true] %s21
      %27 = dma.hbm_to_vmem [thread:$0]  %s0, 256, %s22, [#allocation3], 128, 128, 8
    $region5: #{tpu_custom_call.1} parent=1 // pred_fallthru
      _
    // Predicated region
    $region6: #{tpu_custom_call.1} parent=1 // pred_check
      _
    $region7: #{tpu_custom_call.1} parent=1 // pred_check_branch
      %29 = sbr.rel (0) target = $region9
    $region8: #{tpu_custom_call.1} parent=1 // pred_region
      %s31 = ssub.s32 256, 256
      %32 = vsyncadd [#allocation6], %s31
      %s33 = sshll.u32 [#allocation5], 4
      %s34 = int_to_ptr.vmem [resolvable:$true] %s33
      %39 = dma.hbm_to_vmem [thread:$0]  %s1, 256, %s34, [#allocation6], 128, 128, 8
    $region9: #{tpu_custom_call.1} parent=1 // pred_fallthru
      _
    // Predicated region
    $region10: #{tpu_custom_call.1} parent=1 // pred_check
      _
    $region11: #{tpu_custom_call.1} parent=1 // pred_check_branch
      %41 = sbr.rel (0) target = $region13
    $region12: #{tpu_custom_call.1} parent=1 // pred_region
      %s43 = ssub.s32 256, 256
      %44 = vsyncadd [#allocation6], %s43
      %s45 = sshll.u32 [#allocation7], 4
      %s46 = int_to_ptr.vmem [resolvable:$true] %s45
      %51 = dma.hbm_to_vmem [thread:$0]  %s2, 256, %s46, [#allocation6], 128, 128, 8
    $region13: #{tpu_custom_call.1} parent=1 // pred_fallthru
      _
    // Predicated region
    $region14: #{tpu_custom_call.1} parent=1 // pred_check
      _
    $region15: #{tpu_custom_call.1} parent=1 // pred_check_branch
      %53 = sbr.rel (0) target = $region17
    $region16: #{tpu_custom_call.1} parent=1 // pred_region
      %s55 = ssub.s32 512, 512
      %56 = vsyncadd [#allocation9], %s55
      %s57 = sshll.u32 [#allocation8], 4
      %s58 = int_to_ptr.vmem [resolvable:$true] %s57
      %63 = dma.hbm_to_vmem [thread:$0]  %s3, 512, %s58, [#allocation9], 128, 128, 8
    $region17: #{tpu_custom_call.1} parent=1 // pred_fallthru
      _
    // Predicated region
    $region18: #{tpu_custom_call.1} parent=1 // pred_check
      _
    $region19: #{tpu_custom_call.1} parent=1 // pred_check_branch
      %65 = sbr.rel (0) target = $region21
    $region20: #{tpu_custom_call.1} parent=1 // pred_region
      _
    $region21: #{tpu_custom_call.1} parent=1 // pred_fallthru
      _
    // Predicated region
    $region22: #{tpu_custom_call.1} parent=1 // pred_check
      _
    $region23: #{tpu_custom_call.1} parent=1 // pred_check_branch
      %67 = sbr.rel (0) target = $region25
    $region24: #{tpu_custom_call.1} parent=1 // pred_region
      %s69 = ssub.s32 512, 512
      %70 = vsyncadd [#allocation9], %s69
      %s71 = sshll.u32 [#allocation10], 4
      %s72 = int_to_ptr.vmem [resolvable:$true] %s71
      %77 = dma.hbm_to_vmem [thread:$0]  %s5, 512, %s72, [#allocation9], 128, 128, 8
    $region25: #{tpu_custom_call.1} parent=1 // pred_fallthru
      _
    // Predicated region
    $region26: #{tpu_custom_call.1} parent=1 // pred_check
      _
    $region27: #{tpu_custom_call.1} parent=1 // pred_check_branch
      %79 = sbr.rel (0) target = $region29
    $region28: #{tpu_custom_call.1} parent=1 // pred_region
      _
    $region29: #{tpu_custom_call.1} parent=1 // pred_fallthru
      _
    // Predicated region
    $region30: #{tpu_custom_call.1} parent=1 // pred_check
      _
    $region31: #{tpu_custom_call.1} parent=1 // pred_check_branch
      %81 = sbr.rel (0) target = $region33
    $region32: #{tpu_custom_call.1} parent=1 // pred_region
      %82 = dma.done [#allocation3], 256
    $region33: #{tpu_custom_call.1} parent=1 // pred_fallthru
      _
    // Predicated region
    $region34: #{tpu_custom_call.1} parent=1 // pred_check
      _
    $region35: #{tpu_custom_call.1} parent=1 // pred_check_branch
      %84 = sbr.rel (0) target = $region37
    $region36: #{tpu_custom_call.1} parent=1 // pred_region
      %85 = dma.done [#allocation6], 256
    $region37: #{tpu_custom_call.1} parent=1 // pred_fallthru
      _
    // Predicated region
    $region38: #{tpu_custom_call.1} parent=1 // pred_check
      _
    $region39: #{tpu_custom_call.1} parent=1 // pred_check_branch
      %87 = sbr.rel (0) target = $region41
    $region40: #{tpu_custom_call.1} parent=1 // pred_region
      %88 = dma.done [#allocation6], 256
    $region41: #{tpu_custom_call.1} parent=1 // pred_fallthru
      _
    // Predicated region
    $region42: #{tpu_custom_call.1} parent=1 // pred_check
      _
    $region43: #{tpu_custom_call.1} parent=1 // pred_check_branch
      %90 = sbr.rel (0) target = $region45
    $region44: #{tpu_custom_call.1} parent=1 // pred_region
      %91 = dma.done [#allocation9], 512
    $region45: #{tpu_custom_call.1} parent=1 // pred_fallthru
      _
    // Predicated region
    $region46: #{tpu_custom_call.1} parent=1 // pred_check
      _
    $region47: #{tpu_custom_call.1} parent=1 // pred_check_branch
      %93 = sbr.rel (0) target = $region49
    $region48: #{tpu_custom_call.1} parent=1 // pred_region
      %94 = dma.done [#allocation9], 512
    $region49: #{tpu_custom_call.1} parent=1 // pred_fallthru
      _
    %v95 = vld [vmem:[#allocation2] sm:$0xff]
    %v96 = vld [vmem:[#allocation2 + $0x8] sm:$0xff]
    %v97 = vld [vmem:[#allocation5] sm:$0xff]
    %v98 = vld [vmem:[#allocation5 + $0x8] sm:$0xff]
    %v99 = vld [vmem:[#allocation7] sm:$0xff]
    %v100 = vld [vmem:[#allocation7 + $0x8] sm:$0xff]
    %v101 = vld [vmem:[#allocation8] sm:$0xff]
    %v102 = vld [vmem:[#allocation8 + $0x8] sm:$0xff]
    %v103 = vld [vmem:[#allocation8 + $0x10] sm:$0xff]
    %v104 = vld [vmem:[#allocation8 + $0x18] sm:$0xff]
    %v105 = vld [vmem:[%s4] sm:$0x1]
    %v107 = vlaneseq
    %v108 = vshrl.u32 %v107, 7
    %v109 = vsub.s32 0, %v108
    %v110 = vrot.slane %v105, %v109
    %vm112 = vcmask 261120
    %v114 = vsel %vm112, %v95, 0
    %v117 = vsel %vm112, %v96, 0
    %119 = vmatprep.subr.mxu0 0.0
    %120 = vmatpush1.msra.mxu0 0.0
    %121 = vmatprep.subr.mxu0 0.0
    %122 = vmatpush1.msra.mxu0 0.0
    %123 = vmatprep.subr.mxu0 0.0
    %124 = vmatpush1.msra.mxu0 0.0
    %125 = vmatprep.subr.mxu0 0.0
    %126 = vmatpush1.msra.mxu0 0.0
    %127 = vmatprep.subr.mxu0 0.0
    %128 = vmatpush1.msra.mxu0 0.0
    %129 = vmatprep.subr.mxu0 0.0
    %130 = vmatpush1.msra.mxu0 0.0
    %131 = vmatprep.subr.mxu0 0.0
    %132 = vmatpush1.msra.mxu0 0.0
    %133 = vmatprep.subr.mxu0 0.0
    %134 = vmatpush1.msra.mxu0 0.0
    %135 = vmatprep.subr.mxu0 0.0
    %136 = vmatpush1.msra.mxu0 0.0
    %137 = vmatprep.subr.mxu0 0.0
    %138 = vmatpush1.msra.mxu0 0.0
    %139 = vmatprep.subr.mxu0 0.0
    %140 = vmatpush1.msra.mxu0 0.0
    %141 = vmatprep.subr.mxu0 0.0
    %142 = vmatpush1.msra.mxu0 0.0
    %143 = vmatprep.subr.mxu0 0.0
    %144 = vmatpush1.msra.mxu0 %v104
    %145 = vmatprep.subr.mxu0 0.0
    %146 = vmatpush1.msra.mxu0 %v103
    %147 = vmatprep.subr.mxu0 0.0
    %148 = vmatpush1.msra.mxu0 %v102
    %149 = vmatprep.subr.mxu0 0.0
    %150 = vmatpush1.msra.mxu0 %v101
    %151 = vmatprep.subr.mxu0 0.0
    %152 = vmatpush2.msra.mxu0 0.0
    %153 = vmatprep.subr.mxu0 0.0
    %154 = vmatpush2.msra.mxu0 0.0
    %155 = vmatprep.subr.mxu0 0.0
    %156 = vmatpush2.msra.mxu0 0.0
    %157 = vmatprep.subr.mxu0 0.0
    %158 = vmatpush2.msra.mxu0 0.0
    %159 = vmatprep.subr.mxu0 0.0
    %160 = vmatpush2.msra.mxu0 0.0
    %161 = vmatprep.subr.mxu0 0.0
    %162 = vmatpush2.msra.mxu0 0.0
    %163 = vmatprep.subr.mxu0 0.0
    %164 = vmatpush2.msra.mxu0 0.0
    %165 = vmatprep.subr.mxu0 0.0
    %166 = vmatpush2.msra.mxu0 0.0
    %167 = vmatprep.subr.mxu0 0.0
    %168 = vmatpush2.msra.mxu0 0.0
    %169 = vmatprep.subr.mxu0 0.0
    %170 = vmatpush2.msra.mxu0 0.0
    %171 = vmatprep.subr.mxu0 0.0
    %172 = vmatpush2.msra.mxu0 0.0
    %173 = vmatprep.subr.mxu0 0.0
    %174 = vmatpush2.msra.mxu0 0.0
    %175 = vmatprep.subr.mxu0 0.0
    %176 = vmatpush2.msra.mxu0 0.0
    %177 = vmatprep.subr.mxu0 0.0
    %178 = vmatpush2.msra.mxu0 0.0
    %179 = vmatprep.subr.mxu0 0.0
    %180 = vmatpush2.msra.mxu0 0.0
    %181 = vmatprep.subr.mxu0 0.0
    %182 = vmatpush2.msra.mxu0 0.0
    %183 = vmatprep.mubr.f32.mxu0 0.0
    %184 = vmatmul.mubr.f32.gmra.mxu0 %v114
    %v185 = vpop.f32.mrf.mxu0
    %v186 = vadd.f32 %v110, %v185
    %v187 = vpop.f32.mrf.mxu0
    %188 = vmatprep.mubr.f32.mxu0 0.0
    %189 = vmatmul.mubr.f32.gmra.mxu0 %v117
    %v190 = vpop.f32.mrf.mxu0
    %v191 = vadd.f32 %v110, %v190
    %v192 = vpop.f32.mrf.mxu0
    %193 = vdwg.mxu0
    %196 = vrot.lane.b32.xlu0 %v186, 120
    %v197 = vpop.permute.xlu0 %196
    %198 = vrot.lane.b32.xlu0 %v191, 120
    %v199 = vpop.permute.xlu0 %198
    %202 = vrot.lane.b32.xlu0 %v186, 112
    %v203 = vpop.permute.xlu0 %202
    %204 = vrot.lane.b32.xlu0 %v191, 112
    %v205 = vpop.permute.xlu0 %204
    %208 = vrot.lane.b32.xlu0 %v186, 104
    %v209 = vpop.permute.xlu0 %208
    %210 = vrot.lane.b32.xlu0 %v191, 104
    %v211 = vpop.permute.xlu0 %210
    %v214 = vmul.f32 %v186, 0.35355338
    %v215 = vmul.f32 %v191, 0.35355338
    %v216 = vmul.f32 %v197, 0.35355338
    %v217 = vmul.f32 %v199, 0.35355338
    %v218 = vmul.f32 %v203, 0.35355338
    %v219 = vmul.f32 %v205, 0.35355338
    %v220 = vmul.f32 %v209, 0.35355338
    %v221 = vmul.f32 %v211, 0.35355338
    %222 = vrot.lane.b32.xlu0 %v186, 96
    %v223 = vpop.permute.xlu0 %222
    %224 = vrot.lane.b32.xlu0 %v191, 96
    %v225 = vpop.permute.xlu0 %224
    %226 = vrot.lane.b32.xlu0 %v186, 80
    %v227 = vpop.permute.xlu0 %226
    %228 = vrot.lane.b32.xlu0 %v191, 80
    %v229 = vpop.permute.xlu0 %228
    %vm230 = vcmask 64512
    %v232 = vsel %vm230, %v214, 0
    %v235 = vsel %vm230, %v215, 0
    %v237 = vsel %vm230, %v223, 0
    %v239 = vsel %vm230, %v225, 0
    %241 = vmatprep.subr.mxu0 0.0
    %242 = vmatpush1.xpose.msra.mxu0 0.0
    %243 = vmatprep.subr.mxu0 0.0
    %244 = vmatpush1.xpose.msra.mxu0 0.0
    %245 = vmatprep.subr.mxu0 0.0
    %246 = vmatpush1.xpose.msra.mxu0 0.0
    %247 = vmatprep.subr.mxu0 0.0
    %248 = vmatpush1.xpose.msra.mxu0 0.0
    %249 = vmatprep.subr.mxu0 0.0
    %250 = vmatpush1.xpose.msra.mxu0 0.0
    %251 = vmatprep.subr.mxu0 0.0
    %252 = vmatpush1.xpose.msra.mxu0 0.0
    %253 = vmatprep.subr.mxu0 0.0
    %254 = vmatpush1.xpose.msra.mxu0 0.0
    %255 = vmatprep.subr.mxu0 0.0
    %256 = vmatpush1.xpose.msra.mxu0 0.0
    %257 = vmatprep.subr.mxu0 0.0
    %258 = vmatpush1.xpose.msra.mxu0 0.0
    %259 = vmatprep.subr.mxu0 0.0
    %260 = vmatpush1.xpose.msra.mxu0 0.0
    %261 = vmatprep.subr.mxu0 0.0
    %262 = vmatpush1.xpose.msra.mxu0 0.0
    %263 = vmatprep.subr.mxu0 0.0
    %264 = vmatpush1.xpose.msra.mxu0 0.0
    %265 = vmatprep.subr.mxu0 0.0
    %266 = vmatpush1.xpose.msra.mxu0 0.0
    %267 = vmatprep.subr.mxu0 0.0
    %268 = vmatpush1.xpose.msra.mxu0 0.0
    %269 = vmatprep.subr.mxu0 0.0
    %270 = vmatpush1.xpose.msra.mxu0 %v239
    %271 = vmatprep.subr.mxu0 0.0
    %272 = vmatpush1.xpose.msra.mxu0 %v237
    %273 = vmatprep.subr.mxu0 0.0
    %274 = vmatpush2.xpose.msra.mxu0 0.0
    %275 = vmatprep.subr.mxu0 0.0
    %276 = vmatpush2.xpose.msra.mxu0 0.0
    %277 = vmatprep.subr.mxu0 0.0
    %278 = vmatpush2.xpose.msra.mxu0 0.0
    %279 = vmatprep.subr.mxu0 0.0
    %280 = vmatpush2.xpose.msra.mxu0 0.0
    %281 = vmatprep.subr.mxu0 0.0
    %282 = vmatpush2.xpose.msra.mxu0 0.0
    %283 = vmatprep.subr.mxu0 0.0
    %284 = vmatpush2.xpose.msra.mxu0 0.0
    %285 = vmatprep.subr.mxu0 0.0
    %286 = vmatpush2.xpose.msra.mxu0 0.0
    %287 = vmatprep.subr.mxu0 0.0
    %288 = vmatpush2.xpose.msra.mxu0 0.0
    %289 = vmatprep.subr.mxu0 0.0
    %290 = vmatpush2.xpose.msra.mxu0 0.0
    %291 = vmatprep.subr.mxu0 0.0
    %292 = vmatpush2.xpose.msra.mxu0 0.0
    %293 = vmatprep.subr.mxu0 0.0
    %294 = vmatpush2.xpose.msra.mxu0 0.0
    %295 = vmatprep.subr.mxu0 0.0
    %296 = vmatpush2.xpose.msra.mxu0 0.0
    %297 = vmatprep.subr.mxu0 0.0
    %298 = vmatpush2.xpose.msra.mxu0 0.0
    %299 = vmatprep.subr.mxu0 0.0
    %300 = vmatpush2.xpose.msra.mxu0 0.0
    %301 = vmatprep.subr.mxu0 0.0
    %302 = vmatpush2.xpose.msra.mxu0 0.0
    %303 = vmatprep.subr.mxu0 0.0
    %304 = vmatpush2.xpose.msra.mxu0 0.0
    %305 = vmatprep.mubr.f32.mxu0 0.0
    %306 = vmatmul.mubr.f32.gmra.mxu0 %v232
    %v307 = vpop.f32.mrf.mxu0
    %v308 = vadd.f32 %v99, %v307
    %v309 = vpop.f32.mrf.mxu0
    %310 = vmatprep.mubr.f32.mxu0 0.0
    %311 = vmatmul.mubr.f32.gmra.mxu0 %v235
    %v312 = vpop.f32.mrf.mxu0
    %v313 = vadd.f32 %v100, %v312
    %v314 = vpop.f32.mrf.mxu0
    %315 = vdwg.mxu0
    %316 = vrot.lane.b32.xlu0 %v203, 96
    %v317 = vpop.permute.xlu0 %316
    %318 = vrot.lane.b32.xlu0 %v205, 96
    %v319 = vpop.permute.xlu0 %318
    %v321 = vsel %vm230, %v216, 0
    %v324 = vsel %vm230, %v217, 0
    %v326 = vsel %vm230, %v317, 0
    %v328 = vsel %vm230, %v319, 0
    %330 = vmatprep.subr.mxu0 0.0
    %331 = vmatpush1.xpose.msra.mxu0 0.0
    %332 = vmatprep.subr.mxu0 0.0
    %333 = vmatpush1.xpose.msra.mxu0 0.0
    %334 = vmatprep.subr.mxu0 0.0
    %335 = vmatpush1.xpose.msra.mxu0 0.0
    %336 = vmatprep.subr.mxu0 0.0
    %337 = vmatpush1.xpose.msra.mxu0 0.0
    %338 = vmatprep.subr.mxu0 0.0
    %339 = vmatpush1.xpose.msra.mxu0 0.0
    %340 = vmatprep.subr.mxu0 0.0
    %341 = vmatpush1.xpose.msra.mxu0 0.0
    %342 = vmatprep.subr.mxu0 0.0
    %343 = vmatpush1.xpose.msra.mxu0 0.0
    %344 = vmatprep.subr.mxu0 0.0
    %345 = vmatpush1.xpose.msra.mxu0 0.0
    %346 = vmatprep.subr.mxu0 0.0
    %347 = vmatpush1.xpose.msra.mxu0 0.0
    %348 = vmatprep.subr.mxu0 0.0
    %349 = vmatpush1.xpose.msra.mxu0 0.0
    %350 = vmatprep.subr.mxu0 0.0
    %351 = vmatpush1.xpose.msra.mxu0 0.0
    %352 = vmatprep.subr.mxu0 0.0
    %353 = vmatpush1.xpose.msra.mxu0 0.0
    %354 = vmatprep.subr.mxu0 0.0
    %355 = vmatpush1.xpose.msra.mxu0 0.0
    %356 = vmatprep.subr.mxu0 0.0
    %357 = vmatpush1.xpose.msra.mxu0 0.0
    %358 = vmatprep.subr.mxu0 0.0
    %359 = vmatpush1.xpose.msra.mxu0 %v328
    %360 = vmatprep.subr.mxu0 0.0
    %361 = vmatpush1.xpose.msra.mxu0 %v326
    %362 = vmatprep.subr.mxu0 0.0
    %363 = vmatpush2.xpose.msra.mxu0 0.0
    %364 = vmatprep.subr.mxu0 0.0
    %365 = vmatpush2.xpose.msra.mxu0 0.0
    %366 = vmatprep.subr.mxu0 0.0
    %367 = vmatpush2.xpose.msra.mxu0 0.0
    %368 = vmatprep.subr.mxu0 0.0
    %369 = vmatpush2.xpose.msra.mxu0 0.0
    %370 = vmatprep.subr.mxu0 0.0
    %371 = vmatpush2.xpose.msra.mxu0 0.0
    %372 = vmatprep.subr.mxu0 0.0
    %373 = vmatpush2.xpose.msra.mxu0 0.0
    %374 = vmatprep.subr.mxu0 0.0
    %375 = vmatpush2.xpose.msra.mxu0 0.0
    %376 = vmatprep.subr.mxu0 0.0
    %377 = vmatpush2.xpose.msra.mxu0 0.0
    %378 = vmatprep.subr.mxu0 0.0
    %379 = vmatpush2.xpose.msra.mxu0 0.0
    %380 = vmatprep.subr.mxu0 0.0
    %381 = vmatpush2.xpose.msra.mxu0 0.0
    %382 = vmatprep.subr.mxu0 0.0
    %383 = vmatpush2.xpose.msra.mxu0 0.0
    %384 = vmatprep.subr.mxu0 0.0
    %385 = vmatpush2.xpose.msra.mxu0 0.0
    %386 = vmatprep.subr.mxu0 0.0
    %387 = vmatpush2.xpose.msra.mxu0 0.0
    %388 = vmatprep.subr.mxu0 0.0
    %389 = vmatpush2.xpose.msra.mxu0 0.0
    %390 = vmatprep.subr.mxu0 0.0
    %391 = vmatpush2.xpose.msra.mxu0 0.0
    %392 = vmatprep.subr.mxu0 0.0
    %393 = vmatpush2.xpose.msra.mxu0 0.0
    %394 = vmatprep.mubr.f32.mxu0 0.0
    %395 = vmatmul.mubr.f32.gmra.mxu0 %v321
    %v396 = vpop.f32.mrf.mxu0
    %v397 = vadd.f32 %v99, %v396
    %v398 = vpop.f32.mrf.mxu0
    %399 = vmatprep.mubr.f32.mxu0 0.0
    %400 = vmatmul.mubr.f32.gmra.mxu0 %v324
    %v401 = vpop.f32.mrf.mxu0
    %v402 = vadd.f32 %v100, %v401
    %v403 = vpop.f32.mrf.mxu0
    %404 = vdwg.mxu0
    %405 = vrot.lane.b32.xlu0 %v223, 96
    %v406 = vpop.permute.xlu0 %405
    %407 = vrot.lane.b32.xlu0 %v225, 96
    %v408 = vpop.permute.xlu0 %407
    %v410 = vsel %vm230, %v218, 0
    %v413 = vsel %vm230, %v219, 0
    %v415 = vsel %vm230, %v406, 0
    %v417 = vsel %vm230, %v408, 0
    %419 = vmatprep.subr.mxu0 0.0
    %420 = vmatpush1.xpose.msra.mxu0 0.0
    %421 = vmatprep.subr.mxu0 0.0
    %422 = vmatpush1.xpose.msra.mxu0 0.0
    %423 = vmatprep.subr.mxu0 0.0
    %424 = vmatpush1.xpose.msra.mxu0 0.0
    %425 = vmatprep.subr.mxu0 0.0
    %426 = vmatpush1.xpose.msra.mxu0 0.0
    %427 = vmatprep.subr.mxu0 0.0
    %428 = vmatpush1.xpose.msra.mxu0 0.0
    %429 = vmatprep.subr.mxu0 0.0
    %430 = vmatpush1.xpose.msra.mxu0 0.0
    %431 = vmatprep.subr.mxu0 0.0
    %432 = vmatpush1.xpose.msra.mxu0 0.0
    %433 = vmatprep.subr.mxu0 0.0
    %434 = vmatpush1.xpose.msra.mxu0 0.0
    %435 = vmatprep.subr.mxu0 0.0
    %436 = vmatpush1.xpose.msra.mxu0 0.0
    %437 = vmatprep.subr.mxu0 0.0
    %438 = vmatpush1.xpose.msra.mxu0 0.0
    %439 = vmatprep.subr.mxu0 0.0
    %440 = vmatpush1.xpose.msra.mxu0 0.0
    %441 = vmatprep.subr.mxu0 0.0
    %442 = vmatpush1.xpose.msra.mxu0 0.0
    %443 = vmatprep.subr.mxu0 0.0
    %444 = vmatpush1.xpose.msra.mxu0 0.0
    %445 = vmatprep.subr.mxu0 0.0
    %446 = vmatpush1.xpose.msra.mxu0 0.0
    %447 = vmatprep.subr.mxu0 0.0
    %448 = vmatpush1.xpose.msra.mxu0 %v417
    %449 = vmatprep.subr.mxu0 0.0
    %450 = vmatpush1.xpose.msra.mxu0 %v415
    %451 = vmatprep.subr.mxu0 0.0
    %452 = vmatpush2.xpose.msra.mxu0 0.0
    %453 = vmatprep.subr.mxu0 0.0
    %454 = vmatpush2.xpose.msra.mxu0 0.0
    %455 = vmatprep.subr.mxu0 0.0
    %456 = vmatpush2.xpose.msra.mxu0 0.0
    %457 = vmatprep.subr.mxu0 0.0
    %458 = vmatpush2.xpose.msra.mxu0 0.0
    %459 = vmatprep.subr.mxu0 0.0
    %460 = vmatpush2.xpose.msra.mxu0 0.0
    %461 = vmatprep.subr.mxu0 0.0
    %462 = vmatpush2.xpose.msra.mxu0 0.0
    %463 = vmatprep.subr.mxu0 0.0
    %464 = vmatpush2.xpose.msra.mxu0 0.0
    %465 = vmatprep.subr.mxu0 0.0
    %466 = vmatpush2.xpose.msra.mxu0 0.0
    %467 = vmatprep.subr.mxu0 0.0
    %468 = vmatpush2.xpose.msra.mxu0 0.0
    %469 = vmatprep.subr.mxu0 0.0
    %470 = vmatpush2.xpose.msra.mxu0 0.0
    %471 = vmatprep.subr.mxu0 0.0
    %472 = vmatpush2.xpose.msra.mxu0 0.0
    %473 = vmatprep.subr.mxu0 0.0
    %474 = vmatpush2.xpose.msra.mxu0 0.0
    %475 = vmatprep.subr.mxu0 0.0
    %476 = vmatpush2.xpose.msra.mxu0 0.0
    %477 = vmatprep.subr.mxu0 0.0
    %478 = vmatpush2.xpose.msra.mxu0 0.0
    %479 = vmatprep.subr.mxu0 0.0
    %480 = vmatpush2.xpose.msra.mxu0 0.0
    %481 = vmatprep.subr.mxu0 0.0
    %482 = vmatpush2.xpose.msra.mxu0 0.0
    %483 = vmatprep.mubr.f32.mxu0 0.0
    %484 = vmatmul.mubr.f32.gmra.mxu0 %v410
    %v485 = vpop.f32.mrf.mxu0
    %v486 = vadd.f32 %v99, %v485
    %v487 = vpop.f32.mrf.mxu0
    %488 = vmatprep.mubr.f32.mxu0 0.0
    %489 = vmatmul.mubr.f32.gmra.mxu0 %v413
    %v490 = vpop.f32.mrf.mxu0
    %v491 = vadd.f32 %v100, %v490
    %v492 = vpop.f32.mrf.mxu0
    %493 = vdwg.mxu0
    %494 = vrot.lane.b32.xlu0 %v227, 96
    %v495 = vpop.permute.xlu0 %494
    %496 = vrot.lane.b32.xlu0 %v229, 96
    %v497 = vpop.permute.xlu0 %496
    %v499 = vsel %vm230, %v220, 0
    %v502 = vsel %vm230, %v221, 0
    %v504 = vsel %vm230, %v495, 0
    %v506 = vsel %vm230, %v497, 0
    %508 = vmatprep.subr.mxu0 0.0
    %509 = vmatpush1.xpose.msra.mxu0 0.0
    %510 = vmatprep.subr.mxu0 0.0
    %511 = vmatpush1.xpose.msra.mxu0 0.0
    %512 = vmatprep.subr.mxu0 0.0
    %513 = vmatpush1.xpose.msra.mxu0 0.0
    %514 = vmatprep.subr.mxu0 0.0
    %515 = vmatpush1.xpose.msra.mxu0 0.0
    %516 = vmatprep.subr.mxu0 0.0
    %517 = vmatpush1.xpose.msra.mxu0 0.0
    %518 = vmatprep.subr.mxu0 0.0
    %519 = vmatpush1.xpose.msra.mxu0 0.0
    %520 = vmatprep.subr.mxu0 0.0
    %521 = vmatpush1.xpose.msra.mxu0 0.0
    %522 = vmatprep.subr.mxu0 0.0
    %523 = vmatpush1.xpose.msra.mxu0 0.0
    %524 = vmatprep.subr.mxu0 0.0
    %525 = vmatpush1.xpose.msra.mxu0 0.0
    %526 = vmatprep.subr.mxu0 0.0
    %527 = vmatpush1.xpose.msra.mxu0 0.0
    %528 = vmatprep.subr.mxu0 0.0
    %529 = vmatpush1.xpose.msra.mxu0 0.0
    %530 = vmatprep.subr.mxu0 0.0
    %531 = vmatpush1.xpose.msra.mxu0 0.0
    %532 = vmatprep.subr.mxu0 0.0
    %533 = vmatpush1.xpose.msra.mxu0 0.0
    %534 = vmatprep.subr.mxu0 0.0
    %535 = vmatpush1.xpose.msra.mxu0 0.0
    %536 = vmatprep.subr.mxu0 0.0
    %537 = vmatpush1.xpose.msra.mxu0 %v506
    %538 = vmatprep.subr.mxu0 0.0
    %539 = vmatpush1.xpose.msra.mxu0 %v504
    %540 = vmatprep.subr.mxu0 0.0
    %541 = vmatpush2.xpose.msra.mxu0 0.0
    %542 = vmatprep.subr.mxu0 0.0
    %543 = vmatpush2.xpose.msra.mxu0 0.0
    %544 = vmatprep.subr.mxu0 0.0
    %545 = vmatpush2.xpose.msra.mxu0 0.0
    %546 = vmatprep.subr.mxu0 0.0
    %547 = vmatpush2.xpose.msra.mxu0 0.0
    %548 = vmatprep.subr.mxu0 0.0
    %549 = vmatpush2.xpose.msra.mxu0 0.0
    %550 = vmatprep.subr.mxu0 0.0
    %551 = vmatpush2.xpose.msra.mxu0 0.0
    %552 = vmatprep.subr.mxu0 0.0
    %553 = vmatpush2.xpose.msra.mxu0 0.0
    %554 = vmatprep.subr.mxu0 0.0
    %555 = vmatpush2.xpose.msra.mxu0 0.0
    %556 = vmatprep.subr.mxu0 0.0
    %557 = vmatpush2.xpose.msra.mxu0 0.0
    %558 = vmatprep.subr.mxu0 0.0
    %559 = vmatpush2.xpose.msra.mxu0 0.0
    %560 = vmatprep.subr.mxu0 0.0
    %561 = vmatpush2.xpose.msra.mxu0 0.0
    %562 = vmatprep.subr.mxu0 0.0
    %563 = vmatpush2.xpose.msra.mxu0 0.0
    %564 = vmatprep.subr.mxu0 0.0
    %565 = vmatpush2.xpose.msra.mxu0 0.0
    %566 = vmatprep.subr.mxu0 0.0
    %567 = vmatpush2.xpose.msra.mxu0 0.0
    %568 = vmatprep.subr.mxu0 0.0
    %569 = vmatpush2.xpose.msra.mxu0 0.0
    %570 = vmatprep.subr.mxu0 0.0
    %571 = vmatpush2.xpose.msra.mxu0 0.0
    %572 = vmatprep.mubr.f32.mxu0 0.0
    %573 = vmatmul.mubr.f32.gmra.mxu0 %v499
    %v574 = vpop.f32.mrf.mxu0
    %v575 = vadd.f32 %v99, %v574
    %v576 = vpop.f32.mrf.mxu0
    %577 = vmatprep.mubr.f32.mxu0 0.0
    %578 = vmatmul.mubr.f32.gmra.mxu0 %v502
    %v579 = vpop.f32.mrf.mxu0
    %v580 = vadd.f32 %v100, %v579
    %v581 = vpop.f32.mrf.mxu0
    %582 = vdwg.mxu0
    %vm583 = vcmask 130048
    %v584 = vsel %vm583, %v308, -inf
    %585 = vmax.xlane.f32.xlu0 %v584
    %v586 = vpop.xlane.xlu0 %585
    %v587 = vsel %vm583, %v313, -inf
    %588 = vmax.xlane.f32.xlu0 %v587
    %v589 = vpop.xlane.xlu0 %588
    %v590 = vsel %vm583, %v397, -inf
    %591 = vmax.xlane.f32.xlu0 %v590
    %v592 = vpop.xlane.xlu0 %591
    %v593 = vsel %vm583, %v402, -inf
    %594 = vmax.xlane.f32.xlu0 %v593
    %v595 = vpop.xlane.xlu0 %594
    %v596 = vsel %vm583, %v486, -inf
    %597 = vmax.xlane.f32.xlu0 %v596
    %v598 = vpop.xlane.xlu0 %597
    %v599 = vsel %vm583, %v491, -inf
    %600 = vmax.xlane.f32.xlu0 %v599
    %v601 = vpop.xlane.xlu0 %600
    %v602 = vsel %vm583, %v575, -inf
    %603 = vmax.xlane.f32.xlu0 %v602
    %v604 = vpop.xlane.xlu0 %603
    %v605 = vsel %vm583, %v580, -inf
    %606 = vmax.xlane.f32.xlu0 %v605
    %v607 = vpop.xlane.xlu0 %606
    %v608 = vsub.f32 %v308, %v586
    %v609 = vsub.f32 %v313, %v589
    %v610 = vsub.f32 %v397, %v592
    %v611 = vsub.f32 %v402, %v595
    %v612 = vsub.f32 %v486, %v598
    %v613 = vsub.f32 %v491, %v601
    %v614 = vsub.f32 %v575, %v604
    %v615 = vsub.f32 %v580, %v607
    %v616 = vmul.f32 %v608, 1.442695
    %v617 = vpow.pop %v616
    %v618 = vmul.f32 %v609, 1.442695
    %v619 = vpow.pop %v618
    %v620 = vmul.f32 %v610, 1.442695
    %v621 = vpow.pop %v620
    %v622 = vmul.f32 %v611, 1.442695
    %v623 = vpow.pop %v622
    %v624 = vmul.f32 %v612, 1.442695
    %v625 = vpow.pop %v624
    %v626 = vmul.f32 %v613, 1.442695
    %v627 = vpow.pop %v626
    %v628 = vmul.f32 %v614, 1.442695
    %v629 = vpow.pop %v628
    %v630 = vmul.f32 %v615, 1.442695
    %v631 = vpow.pop %v630
    %v632 = vmul.f32 %v617, %v97
    %v633 = vmul.f32 %v619, %v98
    %v634 = vmul.f32 %v621, %v97
    %v635 = vmul.f32 %v623, %v98
    %v636 = vmul.f32 %v625, %v97
    %v637 = vmul.f32 %v627, %v98
    %v638 = vmul.f32 %v629, %v97
    %v639 = vmul.f32 %v631, %v98
    %v640 = vsel %vm583, %v632, 0.0
    %641 = vadd.xlane.f32.xlu0 %v640
    %v642 = vpop.xlane.xlu0 %641
    %v643 = vsel %vm583, %v633, 0.0
    %644 = vadd.xlane.f32.xlu0 %v643
    %v645 = vpop.xlane.xlu0 %644
    %v646 = vsel %vm583, %v634, 0.0
    %647 = vadd.xlane.f32.xlu0 %v646
    %v648 = vpop.xlane.xlu0 %647
    %v649 = vsel %vm583, %v635, 0.0
    %650 = vadd.xlane.f32.xlu0 %v649
    %v651 = vpop.xlane.xlu0 %650
    %v652 = vsel %vm583, %v636, 0.0
    %653 = vadd.xlane.f32.xlu0 %v652
    %v654 = vpop.xlane.xlu0 %653
    %v655 = vsel %vm583, %v637, 0.0
    %656 = vadd.xlane.f32.xlu0 %v655
    %v657 = vpop.xlane.xlu0 %656
    %v658 = vsel %vm583, %v638, 0.0
    %659 = vadd.xlane.f32.xlu0 %v658
    %v660 = vpop.xlane.xlu0 %659
    %v661 = vsel %vm583, %v639, 0.0
    %662 = vadd.xlane.f32.xlu0 %v661
    %v663 = vpop.xlane.xlu0 %662
    %v664 = vmax.f32 %v642, 1e-30
    %v665 = vmax.f32 %v645, 1e-30
    %v666 = vmax.f32 %v648, 1e-30
    %v667 = vmax.f32 %v651, 1e-30
    %v668 = vmax.f32 %v654, 1e-30
    %v669 = vmax.f32 %v657, 1e-30
    %v670 = vmax.f32 %v660, 1e-30
    %v671 = vmax.f32 %v663, 1e-30
    %v672 = vrcp.pop %v664
    %v673 = vrcp.pop %v665
    %v674 = vrcp.pop %v666
    %v675 = vrcp.pop %v667
    %v676 = vrcp.pop %v668
    %v677 = vrcp.pop %v669
    %v678 = vrcp.pop %v670
    %v679 = vrcp.pop %v671
    %v680 = vmul.f32 %v632, %v672
    %v681 = vmul.f32 %v633, %v673
    %v682 = vmul.f32 %v634, %v674
    %v683 = vmul.f32 %v635, %v675
    %v684 = vmul.f32 %v636, %v676
    %v685 = vmul.f32 %v637, %v677
    %v686 = vmul.f32 %v638, %v678
    %v687 = vmul.f32 %v639, %v679
    %688 = vrot.lane.b32.xlu0 %v186, 88
    %v689 = vpop.permute.xlu0 %688
    %690 = vrot.lane.b32.xlu0 %v191, 88
    %v691 = vpop.permute.xlu0 %690
    %v695 = vsel %vm583, %v680, 0
    %v698 = vsel %vm583, %v681, 0
    %700 = vmatprep.subr.mxu0 0.0
    %701 = vmatpush1.msra.mxu0 0.0
    %702 = vmatprep.subr.mxu0 0.0
    %703 = vmatpush1.msra.mxu0 0.0
    %704 = vmatprep.subr.mxu0 0.0
    %705 = vmatpush1.msra.mxu0 0.0
    %706 = vmatprep.subr.mxu0 0.0
    %707 = vmatpush1.msra.mxu0 0.0
    %708 = vmatprep.subr.mxu0 0.0
    %709 = vmatpush1.msra.mxu0 0.0
    %710 = vmatprep.subr.mxu0 0.0
    %711 = vmatpush1.msra.mxu0 0.0
    %712 = vmatprep.subr.mxu0 0.0
    %713 = vmatpush1.msra.mxu0 0.0
    %714 = vmatprep.subr.mxu0 0.0
    %715 = vmatpush1.msra.mxu0 0.0
    %716 = vmatprep.subr.mxu0 0.0
    %717 = vmatpush1.msra.mxu0 0.0
    %718 = vmatprep.subr.mxu0 0.0
    %719 = vmatpush1.msra.mxu0 0.0
    %720 = vmatprep.subr.mxu0 0.0
    %721 = vmatpush1.msra.mxu0 0.0
    %722 = vmatprep.subr.mxu0 0.0
    %723 = vmatpush1.msra.mxu0 0.0
    %724 = vmatprep.subr.mxu0 0.0
    %725 = vmatpush1.msra.mxu0 0.0
    %726 = vmatprep.subr.mxu0 0.0
    %727 = vmatpush1.msra.mxu0 0.0
    %728 = vmatprep.subr.mxu0 0.0
    %729 = vmatpush1.msra.mxu0 %v691
    %730 = vmatprep.subr.mxu0 0.0
    %731 = vmatpush1.msra.mxu0 %v689
    %732 = vmatprep.subr.mxu0 0.0
    %733 = vmatpush2.msra.mxu0 0.0
    %734 = vmatprep.subr.mxu0 0.0
    %735 = vmatpush2.msra.mxu0 0.0
    %736 = vmatprep.subr.mxu0 0.0
    %737 = vmatpush2.msra.mxu0 0.0
    %738 = vmatprep.subr.mxu0 0.0
    %739 = vmatpush2.msra.mxu0 0.0
    %740 = vmatprep.subr.mxu0 0.0
    %741 = vmatpush2.msra.mxu0 0.0
    %742 = vmatprep.subr.mxu0 0.0
    %743 = vmatpush2.msra.mxu0 0.0
    %744 = vmatprep.subr.mxu0 0.0
    %745 = vmatpush2.msra.mxu0 0.0
    %746 = vmatprep.subr.mxu0 0.0
    %747 = vmatpush2.msra.mxu0 0.0
    %748 = vmatprep.subr.mxu0 0.0
    %749 = vmatpush2.msra.mxu0 0.0
    %750 = vmatprep.subr.mxu0 0.0
    %751 = vmatpush2.msra.mxu0 0.0
    %752 = vmatprep.subr.mxu0 0.0
    %753 = vmatpush2.msra.mxu0 0.0
    %754 = vmatprep.subr.mxu0 0.0
    %755 = vmatpush2.msra.mxu0 0.0
    %756 = vmatprep.subr.mxu0 0.0
    %757 = vmatpush2.msra.mxu0 0.0
    %758 = vmatprep.subr.mxu0 0.0
    %759 = vmatpush2.msra.mxu0 0.0
    %760 = vmatprep.subr.mxu0 0.0
    %761 = vmatpush2.msra.mxu0 0.0
    %762 = vmatprep.subr.mxu0 0.0
    %763 = vmatpush2.msra.mxu0 0.0
    %764 = vmatprep.mubr.f32.mxu0 0.0
    %765 = vmatmul.mubr.f32.gmra.mxu0 %v695
    %v766 = vpop.f32.mrf.mxu0
    %v767 = vadd.f32 0.0, %v766
    %v768 = vpop.f32.mrf.mxu0
    %769 = vmatprep.mubr.f32.mxu0 0.0
    %770 = vmatmul.mubr.f32.gmra.mxu0 %v698
    %v771 = vpop.f32.mrf.mxu0
    %v772 = vadd.f32 0.0, %v771
    %v773 = vpop.f32.mrf.mxu0
    %774 = vdwg.mxu0
    %775 = vrot.lane.b32.xlu0 %v203, 88
    %v776 = vpop.permute.xlu0 %775
    %777 = vrot.lane.b32.xlu0 %v205, 88
    %v778 = vpop.permute.xlu0 %777
    %v782 = vsel %vm583, %v682, 0
    %v785 = vsel %vm583, %v683, 0
    %787 = vmatprep.subr.mxu0 0.0
    %788 = vmatpush1.msra.mxu0 0.0
    %789 = vmatprep.subr.mxu0 0.0
    %790 = vmatpush1.msra.mxu0 0.0
    %791 = vmatprep.subr.mxu0 0.0
    %792 = vmatpush1.msra.mxu0 0.0
    %793 = vmatprep.subr.mxu0 0.0
    %794 = vmatpush1.msra.mxu0 0.0
    %795 = vmatprep.subr.mxu0 0.0
    %796 = vmatpush1.msra.mxu0 0.0
    %797 = vmatprep.subr.mxu0 0.0
    %798 = vmatpush1.msra.mxu0 0.0
    %799 = vmatprep.subr.mxu0 0.0
    %800 = vmatpush1.msra.mxu0 0.0
    %801 = vmatprep.subr.mxu0 0.0
    %802 = vmatpush1.msra.mxu0 0.0
    %803 = vmatprep.subr.mxu0 0.0
    %804 = vmatpush1.msra.mxu0 0.0
    %805 = vmatprep.subr.mxu0 0.0
    %806 = vmatpush1.msra.mxu0 0.0
    %807 = vmatprep.subr.mxu0 0.0
    %808 = vmatpush1.msra.mxu0 0.0
    %809 = vmatprep.subr.mxu0 0.0
    %810 = vmatpush1.msra.mxu0 0.0
    %811 = vmatprep.subr.mxu0 0.0
    %812 = vmatpush1.msra.mxu0 0.0
    %813 = vmatprep.subr.mxu0 0.0
    %814 = vmatpush1.msra.mxu0 0.0
    %815 = vmatprep.subr.mxu0 0.0
    %816 = vmatpush1.msra.mxu0 %v778
    %817 = vmatprep.subr.mxu0 0.0
    %818 = vmatpush1.msra.mxu0 %v776
    %819 = vmatprep.subr.mxu0 0.0
    %820 = vmatpush2.msra.mxu0 0.0
    %821 = vmatprep.subr.mxu0 0.0
    %822 = vmatpush2.msra.mxu0 0.0
    %823 = vmatprep.subr.mxu0 0.0
    %824 = vmatpush2.msra.mxu0 0.0
    %825 = vmatprep.subr.mxu0 0.0
    %826 = vmatpush2.msra.mxu0 0.0
    %827 = vmatprep.subr.mxu0 0.0
    %828 = vmatpush2.msra.mxu0 0.0
    %829 = vmatprep.subr.mxu0 0.0
    %830 = vmatpush2.msra.mxu0 0.0
    %831 = vmatprep.subr.mxu0 0.0
    %832 = vmatpush2.msra.mxu0 0.0
    %833 = vmatprep.subr.mxu0 0.0
    %834 = vmatpush2.msra.mxu0 0.0
    %835 = vmatprep.subr.mxu0 0.0
    %836 = vmatpush2.msra.mxu0 0.0
    %837 = vmatprep.subr.mxu0 0.0
    %838 = vmatpush2.msra.mxu0 0.0
    %839 = vmatprep.subr.mxu0 0.0
    %840 = vmatpush2.msra.mxu0 0.0
    %841 = vmatprep.subr.mxu0 0.0
    %842 = vmatpush2.msra.mxu0 0.0
    %843 = vmatprep.subr.mxu0 0.0
    %844 = vmatpush2.msra.mxu0 0.0
    %845 = vmatprep.subr.mxu0 0.0
    %846 = vmatpush2.msra.mxu0 0.0
    %847 = vmatprep.subr.mxu0 0.0
    %848 = vmatpush2.msra.mxu0 0.0
    %849 = vmatprep.subr.mxu0 0.0
    %850 = vmatpush2.msra.mxu0 0.0
    %851 = vmatprep.mubr.f32.mxu0 0.0
    %852 = vmatmul.mubr.f32.gmra.mxu0 %v782
    %v853 = vpop.f32.mrf.mxu0
    %v854 = vadd.f32 0.0, %v853
    %v855 = vpop.f32.mrf.mxu0
    %856 = vmatprep.mubr.f32.mxu0 0.0
    %857 = vmatmul.mubr.f32.gmra.mxu0 %v785
    %v858 = vpop.f32.mrf.mxu0
    %v859 = vadd.f32 0.0, %v858
    %v860 = vpop.f32.mrf.mxu0
    %861 = vdwg.mxu0
    %862 = vrot.lane.b32.xlu0 %v223, 88
    %v863 = vpop.permute.xlu0 %862
    %864 = vrot.lane.b32.xlu0 %v225, 88
    %v865 = vpop.permute.xlu0 %864
    %v869 = vsel %vm583, %v684, 0
    %v872 = vsel %vm583, %v685, 0
    %874 = vmatprep.subr.mxu0 0.0
    %875 = vmatpush1.msra.mxu0 0.0
    %876 = vmatprep.subr.mxu0 0.0
    %877 = vmatpush1.msra.mxu0 0.0
    %878 = vmatprep.subr.mxu0 0.0
    %879 = vmatpush1.msra.mxu0 0.0
    %880 = vmatprep.subr.mxu0 0.0
    %881 = vmatpush1.msra.mxu0 0.0
    %882 = vmatprep.subr.mxu0 0.0
    %883 = vmatpush1.msra.mxu0 0.0
    %884 = vmatprep.subr.mxu0 0.0
    %885 = vmatpush1.msra.mxu0 0.0
    %886 = vmatprep.subr.mxu0 0.0
    %887 = vmatpush1.msra.mxu0 0.0
    %888 = vmatprep.subr.mxu0 0.0
    %889 = vmatpush1.msra.mxu0 0.0
    %890 = vmatprep.subr.mxu0 0.0
    %891 = vmatpush1.msra.mxu0 0.0
    %892 = vmatprep.subr.mxu0 0.0
    %893 = vmatpush1.msra.mxu0 0.0
    %894 = vmatprep.subr.mxu0 0.0
    %895 = vmatpush1.msra.mxu0 0.0
    %896 = vmatprep.subr.mxu0 0.0
    %897 = vmatpush1.msra.mxu0 0.0
    %898 = vmatprep.subr.mxu0 0.0
    %899 = vmatpush1.msra.mxu0 0.0
    %900 = vmatprep.subr.mxu0 0.0
    %901 = vmatpush1.msra.mxu0 0.0
    %902 = vmatprep.subr.mxu0 0.0
    %903 = vmatpush1.msra.mxu0 %v865
    %904 = vmatprep.subr.mxu0 0.0
    %905 = vmatpush1.msra.mxu0 %v863
    %906 = vmatprep.subr.mxu0 0.0
    %907 = vmatpush2.msra.mxu0 0.0
    %908 = vmatprep.subr.mxu0 0.0
    %909 = vmatpush2.msra.mxu0 0.0
    %910 = vmatprep.subr.mxu0 0.0
    %911 = vmatpush2.msra.mxu0 0.0
    %912 = vmatprep.subr.mxu0 0.0
    %913 = vmatpush2.msra.mxu0 0.0
    %914 = vmatprep.subr.mxu0 0.0
    %915 = vmatpush2.msra.mxu0 0.0
    %916 = vmatprep.subr.mxu0 0.0
    %917 = vmatpush2.msra.mxu0 0.0
    %918 = vmatprep.subr.mxu0 0.0
    %919 = vmatpush2.msra.mxu0 0.0
    %920 = vmatprep.subr.mxu0 0.0
    %921 = vmatpush2.msra.mxu0 0.0
    %922 = vmatprep.subr.mxu0 0.0
    %923 = vmatpush2.msra.mxu0 0.0
    %924 = vmatprep.subr.mxu0 0.0
    %925 = vmatpush2.msra.mxu0 0.0
    %926 = vmatprep.subr.mxu0 0.0
    %927 = vmatpush2.msra.mxu0 0.0
    %928 = vmatprep.subr.mxu0 0.0
    %929 = vmatpush2.msra.mxu0 0.0
    %930 = vmatprep.subr.mxu0 0.0
    %931 = vmatpush2.msra.mxu0 0.0
    %932 = vmatprep.subr.mxu0 0.0
    %933 = vmatpush2.msra.mxu0 0.0
    %934 = vmatprep.subr.mxu0 0.0
    %935 = vmatpush2.msra.mxu0 0.0
    %936 = vmatprep.subr.mxu0 0.0
    %937 = vmatpush2.msra.mxu0 0.0
    %938 = vmatprep.mubr.f32.mxu0 0.0
    %939 = vmatmul.mubr.f32.gmra.mxu0 %v869
    %v940 = vpop.f32.mrf.mxu0
    %v941 = vadd.f32 0.0, %v940
    %v942 = vpop.f32.mrf.mxu0
    %943 = vmatprep.mubr.f32.mxu0 0.0
    %944 = vmatmul.mubr.f32.gmra.mxu0 %v872
    %v945 = vpop.f32.mrf.mxu0
    %v946 = vadd.f32 0.0, %v945
    %v947 = vpop.f32.mrf.mxu0
    %948 = vdwg.mxu0
    %949 = vrot.lane.b32.xlu0 %v227, 88
    %v950 = vpop.permute.xlu0 %949
    %951 = vrot.lane.b32.xlu0 %v229, 88
    %v952 = vpop.permute.xlu0 %951
    %v956 = vsel %vm583, %v686, 0
    %v959 = vsel %vm583, %v687, 0
    %961 = vmatprep.subr.mxu0 0.0
    %962 = vmatpush1.msra.mxu0 0.0
    %963 = vmatprep.subr.mxu0 0.0
    %964 = vmatpush1.msra.mxu0 0.0
    %965 = vmatprep.subr.mxu0 0.0
    %966 = vmatpush1.msra.mxu0 0.0
    %967 = vmatprep.subr.mxu0 0.0
    %968 = vmatpush1.msra.mxu0 0.0
    %969 = vmatprep.subr.mxu0 0.0
    %970 = vmatpush1.msra.mxu0 0.0
    %971 = vmatprep.subr.mxu0 0.0
    %972 = vmatpush1.msra.mxu0 0.0
    %973 = vmatprep.subr.mxu0 0.0
    %974 = vmatpush1.msra.mxu0 0.0
    %975 = vmatprep.subr.mxu0 0.0
    %976 = vmatpush1.msra.mxu0 0.0
    %977 = vmatprep.subr.mxu0 0.0
    %978 = vmatpush1.msra.mxu0 0.0
    %979 = vmatprep.subr.mxu0 0.0
    %980 = vmatpush1.msra.mxu0 0.0
    %981 = vmatprep.subr.mxu0 0.0
    %982 = vmatpush1.msra.mxu0 0.0
    %983 = vmatprep.subr.mxu0 0.0
    %984 = vmatpush1.msra.mxu0 0.0
    %985 = vmatprep.subr.mxu0 0.0
    %986 = vmatpush1.msra.mxu0 0.0
    %987 = vmatprep.subr.mxu0 0.0
    %988 = vmatpush1.msra.mxu0 0.0
    %989 = vmatprep.subr.mxu0 0.0
    %990 = vmatpush1.msra.mxu0 %v952
    %991 = vmatprep.subr.mxu0 0.0
    %992 = vmatpush1.msra.mxu0 %v950
    %993 = vmatprep.subr.mxu0 0.0
    %994 = vmatpush2.msra.mxu0 0.0
    %995 = vmatprep.subr.mxu0 0.0
    %996 = vmatpush2.msra.mxu0 0.0
    %997 = vmatprep.subr.mxu0 0.0
    %998 = vmatpush2.msra.mxu0 0.0
    %999 = vmatprep.subr.mxu0 0.0
    %1000 = vmatpush2.msra.mxu0 0.0
    %1001 = vmatprep.subr.mxu0 0.0
    %1002 = vmatpush2.msra.mxu0 0.0
    %1003 = vmatprep.subr.mxu0 0.0
    %1004 = vmatpush2.msra.mxu0 0.0
    %1005 = vmatprep.subr.mxu0 0.0
    %1006 = vmatpush2.msra.mxu0 0.0
    %1007 = vmatprep.subr.mxu0 0.0
    %1008 = vmatpush2.msra.mxu0 0.0
    %1009 = vmatprep.subr.mxu0 0.0
    %1010 = vmatpush2.msra.mxu0 0.0
    %1011 = vmatprep.subr.mxu0 0.0
    %1012 = vmatpush2.msra.mxu0 0.0
    %1013 = vmatprep.subr.mxu0 0.0
    %1014 = vmatpush2.msra.mxu0 0.0
    %1015 = vmatprep.subr.mxu0 0.0
    %1016 = vmatpush2.msra.mxu0 0.0
    %1017 = vmatprep.subr.mxu0 0.0
    %1018 = vmatpush2.msra.mxu0 0.0
    %1019 = vmatprep.subr.mxu0 0.0
    %1020 = vmatpush2.msra.mxu0 0.0
    %1021 = vmatprep.subr.mxu0 0.0
    %1022 = vmatpush2.msra.mxu0 0.0
    %1023 = vmatprep.subr.mxu0 0.0
    %1024 = vmatpush2.msra.mxu0 0.0
    %1025 = vmatprep.mubr.f32.mxu0 0.0
    %1026 = vmatmul.mubr.f32.gmra.mxu0 %v956
    %v1027 = vpop.f32.mrf.mxu0
    %v1028 = vadd.f32 0.0, %v1027
    %v1029 = vpop.f32.mrf.mxu0
    %1030 = vmatprep.mubr.f32.mxu0 0.0
    %1031 = vmatmul.mubr.f32.gmra.mxu0 %v959
    %v1032 = vpop.f32.mrf.mxu0
    %v1033 = vadd.f32 0.0, %v1032
    %v1034 = vpop.f32.mrf.mxu0
    %1035 = vdwg.mxu0
    %v1036 = vld [vmem:[#allocation10] sm:$0xff]
    %v1037 = vld [vmem:[#allocation10 + $0x8] sm:$0xff]
    %v1038 = vld [vmem:[#allocation10 + $0x10] sm:$0xff]
    %v1039 = vld [vmem:[#allocation10 + $0x18] sm:$0xff]
    %v1041 = vsel %vm230, %v767, 0
    %v1044 = vsel %vm230, %v772, 0
    %1046 = vmatprep.subr.mxu0 0.0
    %1047 = vmatpush1.msra.mxu0 0.0
    %1048 = vmatprep.subr.mxu0 0.0
    %1049 = vmatpush1.msra.mxu0 0.0
    %1050 = vmatprep.subr.mxu0 0.0
    %1051 = vmatpush1.msra.mxu0 0.0
    %1052 = vmatprep.subr.mxu0 0.0
    %1053 = vmatpush1.msra.mxu0 0.0
    %1054 = vmatprep.subr.mxu0 0.0
    %1055 = vmatpush1.msra.mxu0 0.0
    %1056 = vmatprep.subr.mxu0 0.0
    %1057 = vmatpush1.msra.mxu0 0.0
    %1058 = vmatprep.subr.mxu0 0.0
    %1059 = vmatpush1.msra.mxu0 0.0
    %1060 = vmatprep.subr.mxu0 0.0
    %1061 = vmatpush1.msra.mxu0 0.0
    %1062 = vmatprep.subr.mxu0 0.0
    %1063 = vmatpush1.msra.mxu0 0.0
    %1064 = vmatprep.subr.mxu0 0.0
    %1065 = vmatpush1.msra.mxu0 0.0
    %1066 = vmatprep.subr.mxu0 0.0
    %1067 = vmatpush1.msra.mxu0 0.0
    %1068 = vmatprep.subr.mxu0 0.0
    %1069 = vmatpush1.msra.mxu0 0.0
    %1070 = vmatprep.subr.mxu0 0.0
    %1071 = vmatpush1.msra.mxu0 0.0
    %1072 = vmatprep.subr.mxu0 0.0
    %1073 = vmatpush1.msra.mxu0 0.0
    %1074 = vmatprep.subr.mxu0 0.0
    %1075 = vmatpush1.msra.mxu0 0.0
    %1076 = vmatprep.subr.mxu0 0.0
    %1077 = vmatpush1.msra.mxu0 %v1036
    %1078 = vmatprep.subr.mxu0 0.0
    %1079 = vmatpush2.msra.mxu0 0.0
    %1080 = vmatprep.subr.mxu0 0.0
    %1081 = vmatpush2.msra.mxu0 0.0
    %1082 = vmatprep.subr.mxu0 0.0
    %1083 = vmatpush2.msra.mxu0 0.0
    %1084 = vmatprep.subr.mxu0 0.0
    %1085 = vmatpush2.msra.mxu0 0.0
    %1086 = vmatprep.subr.mxu0 0.0
    %1087 = vmatpush2.msra.mxu0 0.0
    %1088 = vmatprep.subr.mxu0 0.0
    %1089 = vmatpush2.msra.mxu0 0.0
    %1090 = vmatprep.subr.mxu0 0.0
    %1091 = vmatpush2.msra.mxu0 0.0
    %1092 = vmatprep.subr.mxu0 0.0
    %1093 = vmatpush2.msra.mxu0 0.0
    %1094 = vmatprep.subr.mxu0 0.0
    %1095 = vmatpush2.msra.mxu0 0.0
    %1096 = vmatprep.subr.mxu0 0.0
    %1097 = vmatpush2.msra.mxu0 0.0
    %1098 = vmatprep.subr.mxu0 0.0
    %1099 = vmatpush2.msra.mxu0 0.0
    %1100 = vmatprep.subr.mxu0 0.0
    %1101 = vmatpush2.msra.mxu0 0.0
    %1102 = vmatprep.subr.mxu0 0.0
    %1103 = vmatpush2.msra.mxu0 0.0
    %1104 = vmatprep.subr.mxu0 0.0
    %1105 = vmatpush2.msra.mxu0 0.0
    %1106 = vmatprep.subr.mxu0 0.0
    %1107 = vmatpush2.msra.mxu0 0.0
    %1108 = vmatprep.subr.mxu0 0.0
    %1109 = vmatpush2.msra.mxu0 0.0
    %1110 = vmatprep.mubr.f32.mxu0 0.0
    %1111 = vmatmul.mubr.f32.gmra.mxu0 %v1041
    %v1112 = vpop.f32.mrf.mxu0
    %v1113 = vadd.f32 0.0, %v1112
    %v1114 = vpop.f32.mrf.mxu0
    %1115 = vmatprep.mubr.f32.mxu0 0.0
    %1116 = vmatmul.mubr.f32.gmra.mxu0 %v1044
    %v1117 = vpop.f32.mrf.mxu0
    %v1118 = vadd.f32 0.0, %v1117
    %v1119 = vpop.f32.mrf.mxu0
    %1120 = vdwg.mxu0
    %v1122 = vsel %vm230, %v854, 0
    %v1125 = vsel %vm230, %v859, 0
    %1127 = vmatprep.subr.mxu0 0.0
    %1128 = vmatpush1.msra.mxu0 0.0
    %1129 = vmatprep.subr.mxu0 0.0
    %1130 = vmatpush1.msra.mxu0 0.0
    %1131 = vmatprep.subr.mxu0 0.0
    %1132 = vmatpush1.msra.mxu0 0.0
    %1133 = vmatprep.subr.mxu0 0.0
    %1134 = vmatpush1.msra.mxu0 0.0
    %1135 = vmatprep.subr.mxu0 0.0
    %1136 = vmatpush1.msra.mxu0 0.0
    %1137 = vmatprep.subr.mxu0 0.0
    %1138 = vmatpush1.msra.mxu0 0.0
    %1139 = vmatprep.subr.mxu0 0.0
    %1140 = vmatpush1.msra.mxu0 0.0
    %1141 = vmatprep.subr.mxu0 0.0
    %1142 = vmatpush1.msra.mxu0 0.0
    %1143 = vmatprep.subr.mxu0 0.0
    %1144 = vmatpush1.msra.mxu0 0.0
    %1145 = vmatprep.subr.mxu0 0.0
    %1146 = vmatpush1.msra.mxu0 0.0
    %1147 = vmatprep.subr.mxu0 0.0
    %1148 = vmatpush1.msra.mxu0 0.0
    %1149 = vmatprep.subr.mxu0 0.0
    %1150 = vmatpush1.msra.mxu0 0.0
    %1151 = vmatprep.subr.mxu0 0.0
    %1152 = vmatpush1.msra.mxu0 0.0
    %1153 = vmatprep.subr.mxu0 0.0
    %1154 = vmatpush1.msra.mxu0 0.0
    %1155 = vmatprep.subr.mxu0 0.0
    %1156 = vmatpush1.msra.mxu0 0.0
    %1157 = vmatprep.subr.mxu0 0.0
    %1158 = vmatpush1.msra.mxu0 %v1037
    %1159 = vmatprep.subr.mxu0 0.0
    %1160 = vmatpush2.msra.mxu0 0.0
    %1161 = vmatprep.subr.mxu0 0.0
    %1162 = vmatpush2.msra.mxu0 0.0
    %1163 = vmatprep.subr.mxu0 0.0
    %1164 = vmatpush2.msra.mxu0 0.0
    %1165 = vmatprep.subr.mxu0 0.0
    %1166 = vmatpush2.msra.mxu0 0.0
    %1167 = vmatprep.subr.mxu0 0.0
    %1168 = vmatpush2.msra.mxu0 0.0
    %1169 = vmatprep.subr.mxu0 0.0
    %1170 = vmatpush2.msra.mxu0 0.0
    %1171 = vmatprep.subr.mxu0 0.0
    %1172 = vmatpush2.msra.mxu0 0.0
    %1173 = vmatprep.subr.mxu0 0.0
    %1174 = vmatpush2.msra.mxu0 0.0
    %1175 = vmatprep.subr.mxu0 0.0
    %1176 = vmatpush2.msra.mxu0 0.0
    %1177 = vmatprep.subr.mxu0 0.0
    %1178 = vmatpush2.msra.mxu0 0.0
    %1179 = vmatprep.subr.mxu0 0.0
    %1180 = vmatpush2.msra.mxu0 0.0
    %1181 = vmatprep.subr.mxu0 0.0
    %1182 = vmatpush2.msra.mxu0 0.0
    %1183 = vmatprep.subr.mxu0 0.0
    %1184 = vmatpush2.msra.mxu0 0.0
    %1185 = vmatprep.subr.mxu0 0.0
    %1186 = vmatpush2.msra.mxu0 0.0
    %1187 = vmatprep.subr.mxu0 0.0
    %1188 = vmatpush2.msra.mxu0 0.0
    %1189 = vmatprep.subr.mxu0 0.0
    %1190 = vmatpush2.msra.mxu0 0.0
    %1191 = vmatprep.mubr.f32.mxu0 0.0
    %1192 = vmatmul.mubr.f32.gmra.mxu0 %v1122
    %v1193 = vpop.f32.mrf.mxu0
    %v1194 = vadd.f32 0.0, %v1193
    %v1195 = vpop.f32.mrf.mxu0
    %1196 = vmatprep.mubr.f32.mxu0 0.0
    %1197 = vmatmul.mubr.f32.gmra.mxu0 %v1125
    %v1198 = vpop.f32.mrf.mxu0
    %v1199 = vadd.f32 0.0, %v1198
    %v1200 = vpop.f32.mrf.mxu0
    %1201 = vdwg.mxu0
    %v1203 = vsel %vm230, %v941, 0
    %v1206 = vsel %vm230, %v946, 0
    %1208 = vmatprep.subr.mxu0 0.0
    %1209 = vmatpush1.msra.mxu0 0.0
    %1210 = vmatprep.subr.mxu0 0.0
    %1211 = vmatpush1.msra.mxu0 0.0
    %1212 = vmatprep.subr.mxu0 0.0
    %1213 = vmatpush1.msra.mxu0 0.0
    %1214 = vmatprep.subr.mxu0 0.0
    %1215 = vmatpush1.msra.mxu0 0.0
    %1216 = vmatprep.subr.mxu0 0.0
    %1217 = vmatpush1.msra.mxu0 0.0
    %1218 = vmatprep.subr.mxu0 0.0
    %1219 = vmatpush1.msra.mxu0 0.0
    %1220 = vmatprep.subr.mxu0 0.0
    %1221 = vmatpush1.msra.mxu0 0.0
    %1222 = vmatprep.subr.mxu0 0.0
    %1223 = vmatpush1.msra.mxu0 0.0
    %1224 = vmatprep.subr.mxu0 0.0
    %1225 = vmatpush1.msra.mxu0 0.0
    %1226 = vmatprep.subr.mxu0 0.0
    %1227 = vmatpush1.msra.mxu0 0.0
    %1228 = vmatprep.subr.mxu0 0.0
    %1229 = vmatpush1.msra.mxu0 0.0
    %1230 = vmatprep.subr.mxu0 0.0
    %1231 = vmatpush1.msra.mxu0 0.0
    %1232 = vmatprep.subr.mxu0 0.0
    %1233 = vmatpush1.msra.mxu0 0.0
    %1234 = vmatprep.subr.mxu0 0.0
    %1235 = vmatpush1.msra.mxu0 0.0
    %1236 = vmatprep.subr.mxu0 0.0
    %1237 = vmatpush1.msra.mxu0 0.0
    %1238 = vmatprep.subr.mxu0 0.0
    %1239 = vmatpush1.msra.mxu0 %v1038
    %1240 = vmatprep.subr.mxu0 0.0
    %1241 = vmatpush2.msra.mxu0 0.0
    %1242 = vmatprep.subr.mxu0 0.0
    %1243 = vmatpush2.msra.mxu0 0.0
    %1244 = vmatprep.subr.mxu0 0.0
    %1245 = vmatpush2.msra.mxu0 0.0
    %1246 = vmatprep.subr.mxu0 0.0
    %1247 = vmatpush2.msra.mxu0 0.0
    %1248 = vmatprep.subr.mxu0 0.0
    %1249 = vmatpush2.msra.mxu0 0.0
    %1250 = vmatprep.subr.mxu0 0.0
    %1251 = vmatpush2.msra.mxu0 0.0
    %1252 = vmatprep.subr.mxu0 0.0
    %1253 = vmatpush2.msra.mxu0 0.0
    %1254 = vmatprep.subr.mxu0 0.0
    %1255 = vmatpush2.msra.mxu0 0.0
    %1256 = vmatprep.subr.mxu0 0.0
    %1257 = vmatpush2.msra.mxu0 0.0
    %1258 = vmatprep.subr.mxu0 0.0
    %1259 = vmatpush2.msra.mxu0 0.0
    %1260 = vmatprep.subr.mxu0 0.0
    %1261 = vmatpush2.msra.mxu0 0.0
    %1262 = vmatprep.subr.mxu0 0.0
    %1263 = vmatpush2.msra.mxu0 0.0
    %1264 = vmatprep.subr.mxu0 0.0
    %1265 = vmatpush2.msra.mxu0 0.0
    %1266 = vmatprep.subr.mxu0 0.0
    %1267 = vmatpush2.msra.mxu0 0.0
    %1268 = vmatprep.subr.mxu0 0.0
    %1269 = vmatpush2.msra.mxu0 0.0
    %1270 = vmatprep.subr.mxu0 0.0
    %1271 = vmatpush2.msra.mxu0 0.0
    %1272 = vmatprep.mubr.f32.mxu0 0.0
    %1273 = vmatmul.mubr.f32.gmra.mxu0 %v1203
    %v1274 = vpop.f32.mrf.mxu0
    %v1275 = vadd.f32 0.0, %v1274
    %v1276 = vpop.f32.mrf.mxu0
    %1277 = vmatprep.mubr.f32.mxu0 0.0
    %1278 = vmatmul.mubr.f32.gmra.mxu0 %v1206
    %v1279 = vpop.f32.mrf.mxu0
    %v1280 = vadd.f32 0.0, %v1279
    %v1281 = vpop.f32.mrf.mxu0
    %1282 = vdwg.mxu0
    %v1284 = vsel %vm230, %v1028, 0
    %v1287 = vsel %vm230, %v1033, 0
    %1289 = vmatprep.subr.mxu0 0.0
    %1290 = vmatpush1.msra.mxu0 0.0
    %1291 = vmatprep.subr.mxu0 0.0
    %1292 = vmatpush1.msra.mxu0 0.0
    %1293 = vmatprep.subr.mxu0 0.0
    %1294 = vmatpush1.msra.mxu0 0.0
    %1295 = vmatprep.subr.mxu0 0.0
    %1296 = vmatpush1.msra.mxu0 0.0
    %1297 = vmatprep.subr.mxu0 0.0
    %1298 = vmatpush1.msra.mxu0 0.0
    %1299 = vmatprep.subr.mxu0 0.0
    %1300 = vmatpush1.msra.mxu0 0.0
    %1301 = vmatprep.subr.mxu0 0.0
    %1302 = vmatpush1.msra.mxu0 0.0
    %1303 = vmatprep.subr.mxu0 0.0
    %1304 = vmatpush1.msra.mxu0 0.0
    %1305 = vmatprep.subr.mxu0 0.0
    %1306 = vmatpush1.msra.mxu0 0.0
    %1307 = vmatprep.subr.mxu0 0.0
    %1308 = vmatpush1.msra.mxu0 0.0
    %1309 = vmatprep.subr.mxu0 0.0
    %1310 = vmatpush1.msra.mxu0 0.0
    %1311 = vmatprep.subr.mxu0 0.0
    %1312 = vmatpush1.msra.mxu0 0.0
    %1313 = vmatprep.subr.mxu0 0.0
    %1314 = vmatpush1.msra.mxu0 0.0
    %1315 = vmatprep.subr.mxu0 0.0
    %1316 = vmatpush1.msra.mxu0 0.0
    %1317 = vmatprep.subr.mxu0 0.0
    %1318 = vmatpush1.msra.mxu0 0.0
    %1319 = vmatprep.subr.mxu0 0.0
    %1320 = vmatpush1.msra.mxu0 %v1039
    %1321 = vmatprep.subr.mxu0 0.0
    %1322 = vmatpush2.msra.mxu0 0.0
    %1323 = vmatprep.subr.mxu0 0.0
    %1324 = vmatpush2.msra.mxu0 0.0
    %1325 = vmatprep.subr.mxu0 0.0
    %1326 = vmatpush2.msra.mxu0 0.0
    %1327 = vmatprep.subr.mxu0 0.0
    %1328 = vmatpush2.msra.mxu0 0.0
    %1329 = vmatprep.subr.mxu0 0.0
    %1330 = vmatpush2.msra.mxu0 0.0
    %1331 = vmatprep.subr.mxu0 0.0
    %1332 = vmatpush2.msra.mxu0 0.0
    %1333 = vmatprep.subr.mxu0 0.0
    %1334 = vmatpush2.msra.mxu0 0.0
    %1335 = vmatprep.subr.mxu0 0.0
    %1336 = vmatpush2.msra.mxu0 0.0
    %1337 = vmatprep.subr.mxu0 0.0
    %1338 = vmatpush2.msra.mxu0 0.0
    %1339 = vmatprep.subr.mxu0 0.0
    %1340 = vmatpush2.msra.mxu0 0.0
    %1341 = vmatprep.subr.mxu0 0.0
    %1342 = vmatpush2.msra.mxu0 0.0
    %1343 = vmatprep.subr.mxu0 0.0
    %1344 = vmatpush2.msra.mxu0 0.0
    %1345 = vmatprep.subr.mxu0 0.0
    %1346 = vmatpush2.msra.mxu0 0.0
    %1347 = vmatprep.subr.mxu0 0.0
    %1348 = vmatpush2.msra.mxu0 0.0
    %1349 = vmatprep.subr.mxu0 0.0
    %1350 = vmatpush2.msra.mxu0 0.0
    %1351 = vmatprep.subr.mxu0 0.0
    %1352 = vmatpush2.msra.mxu0 0.0
    %1353 = vmatprep.mubr.f32.mxu0 0.0
    %1354 = vmatmul.mubr.f32.gmra.mxu0 %v1284
    %v1355 = vpop.f32.mrf.mxu0
    %v1356 = vadd.f32 0.0, %v1355
    %v1357 = vpop.f32.mrf.mxu0
    %1358 = vmatprep.mubr.f32.mxu0 0.0
    %1359 = vmatmul.mubr.f32.gmra.mxu0 %v1287
    %v1360 = vpop.f32.mrf.mxu0
    %v1361 = vadd.f32 0.0, %v1360
    %v1362 = vpop.f32.mrf.mxu0
    %1363 = vdwg.mxu0
    %v1364 = vsel %vm112, %v1113, 0.0
    %v1365 = vsel %vm112, %v1194, 0.0
    %v1366 = vadd.f32 %v1364, %v1365
    %v1367 = vsel %vm112, %v1275, 0.0
    %v1368 = vadd.f32 %v1366, %v1367
    %v1369 = vsel %vm112, %v1356, 0.0
    %v1370 = vadd.f32 %v1368, %v1369
    %v1371 = vsel %vm112, %v1118, 0.0
    %v1372 = vsel %vm112, %v1199, 0.0
    %v1373 = vadd.f32 %v1371, %v1372
    %v1374 = vsel %vm112, %v1280, 0.0
    %v1375 = vadd.f32 %v1373, %v1374
    %v1376 = vsel %vm112, %v1361, 0.0
    %v1377 = vadd.f32 %v1375, %v1376
    %v1378 = vld [vmem:[%s6] sm:$0x1]
    %v1380 = vlaneseq
    %v1381 = vshrl.u32 %v1380, 7
    %v1382 = vsub.s32 0, %v1381
    %v1383 = vrot.slane %v1378, %v1382
    %v1385 = vadd.f32 %v1370, %v1383
    %v1386 = vadd.f32 %v1377, %v1383
    %1387 = vst.msk [vmem:[#allocation11] sm:$0xff] %vm112, %v1385
    %1388 = vst.msk [vmem:[#allocation11 + $0x8] sm:$0xff] %vm112, %v1386
    // Predicated region
    $region50: #{tpu_custom_call.1} parent=1 // pred_check
      _
    $region51: #{tpu_custom_call.1} parent=1 // pred_check_branch
      %1390 = sbr.rel (0) target = $region53
    $region52: #{tpu_custom_call.1} parent=1 // pred_region
      %s1392 = ssub.s32 256, 256
      %1393 = vsyncadd [#allocation4], %s1392
      %s1394 = sshll.u32 [#allocation11], 4
      %s1395 = int_to_ptr.vmem [resolvable:$true] %s1394
      %1400 = dma.vmem_to_hbm [thread:$0]  %s1395, 256, %s7, [#allocation4], 128, 128, 8
    $region53: #{tpu_custom_call.1} parent=1 // pred_fallthru
      _
    // Predicated region
    $region54: #{tpu_custom_call.1} parent=1 // pred_check
      _
    $region55: #{tpu_custom_call.1} parent=1 // pred_check_branch
      %1402 = sbr.rel (0) target = $region57
    $region56: #{tpu_custom_call.1} parent=1 // pred_region
      %1403 = dma.done [#allocation4], 256
    $region57: #{tpu_custom_call.1} parent=1 // pred_fallthru
      _
    %1404 = vsyncpa [#allocation3], 1
    %1405 = vsyncpa [#allocation6], 1
    %1406 = vsyncpa [#allocation9], 1
    %1407 = vsyncpa [#allocation4], 1

</llo_original>
